<compile_context>
chip_gen: v7x
topology: tpu7x:2x2x1
jax: 0.10.0
libtpu: 0.0.40
codegen_flags: <defaults>
</compile_context>

<pallas_src>
import functools
import math

import jax
import jax.numpy as jnp
from jax.experimental import pallas as pl
from jax.experimental.pallas import tpu as pltpu


def _pair(v):
    return tuple(v) if isinstance(v, (tuple, list)) else (v, v)


# ------------------------------ Pallas kernel -------------------------------

def _same_pad_kernel(x_ref, o_ref, *, p_top, p_bot, p_left, p_right):
    """x_ref: (tm, H, W) -> o_ref: (tm, H+p_top+p_bot, W+p_left+p_right).

    Builds the padded tile in registers (zeros concatenated around the data on the
    lane and sublane axes) and writes it with a single full-block store.
    """
    x = x_ref[...]
    tm, h, w = x.shape
    dt = x.dtype
    wp = w + p_left + p_right

    rows = x
    if p_left or p_right:
        parts = []
        if p_left:
            parts.append(jnp.zeros((tm, h, p_left), dt))
        parts.append(x)
        if p_right:
            parts.append(jnp.zeros((tm, h, p_right), dt))
        rows = jnp.concatenate(parts, axis=2)

    out = rows
    if p_top or p_bot:
        parts = []
        if p_top:
            parts.append(jnp.zeros((tm, p_top, wp), dt))
        parts.append(rows)
        if p_bot:
            parts.append(jnp.zeros((tm, p_bot, wp), dt))
        out = jnp.concatenate(parts, axis=1)

    o_ref[...] = out


# ------------------------------- wrapper ------------------------------------

def _zero_pad_nchw(x, pad_d2, pad_d3):
    """Zero-pad dim 2 by pad_d2=(top,bottom) and dim 3 by pad_d3=(left,right)."""
    p_top, p_bot = pad_d2
    p_left, p_right = pad_d3
    n, c, h, w = x.shape

    # F.pad semantics: negative padding crops.  Handle as glue slicing.
    x = x[:, :, max(0, -p_top): h - max(0, -p_bot),
          max(0, -p_left): w - max(0, -p_right)]
    p_top, p_bot = max(0, p_top), max(0, p_bot)
    p_left, p_right = max(0, p_left), max(0, p_right)
    n, c, h, w = x.shape

    if p_top == p_bot == p_left == p_right == 0:
        return x

    hp, wp = h + p_top + p_bot, w + p_left + p_right
    m = n * c
    x3 = x.reshape(m, h, w)

    itemsize = jnp.dtype(x.dtype).itemsize
    per_item = (h * w + hp * wp) * itemsize * 2        # double-buffered in + out
    budget = 8 << 20
    tm = 1
    for d in range(1, m + 1):                          # largest divisor of m in budget
        if m % d == 0 and d * per_item <= budget:
            tm = d
    tile_bytes = tm * per_item
    vmem_limit = int(min(56 << 20, max(8 << 20, 2 * tile_bytes)))

    out = pl.pallas_call(
        functools.partial(_same_pad_kernel, p_top=p_top, p_bot=p_bot,
                          p_left=p_left, p_right=p_right),
        out_shape=jax.ShapeDtypeStruct((m, hp, wp), x.dtype),
        grid=(m // tm,),
        in_specs=[pl.BlockSpec((tm, h, w), lambda i: (i, 0, 0))],
        out_specs=pl.BlockSpec((tm, hp, wp), lambda i: (i, 0, 0)),
        compiler_params=pltpu.CompilerParams(
            dimension_semantics=("parallel",),
            vmem_limit_bytes=vmem_limit),
        cost_estimate=pl.CostEstimate(
            flops=0, transcendentals=0,
            bytes_accessed=int(m * (h * w + hp * wp) * itemsize)),
    )(x3)
    return out.reshape(n, c, hp, wp)


def same_pad_2d(x, kernel_size, stride):
    """Exact forward of the PyTorch SamePad2d module (NCHW input)."""
    kernel_size = _pair(kernel_size)
    stride = _pair(stride)
    in_width = x.shape[2]                              # module: input.size()[2]
    in_height = x.shape[3]                             # module: input.size()[3]
    out_width = math.ceil(float(in_width) / float(stride[0]))
    out_height = math.ceil(float(in_height) / float(stride[1]))
    pad_along_width = (out_width - 1) * stride[0] + kernel_size[0] - in_width
    pad_along_height = (out_height - 1) * stride[1] + kernel_size[1] - in_height
    pad_left = math.floor(pad_along_width / 2)
    pad_top = math.floor(pad_along_height / 2)
    pad_right = pad_along_width - pad_left
    pad_bottom = pad_along_height - pad_top
    # F.pad(x, (pad_left, pad_right, pad_top, pad_bottom)):
    #   last dim (dim 3) gets (pad_left, pad_right); dim 2 gets (pad_top, pad_bottom).
    return _zero_pad_nchw(x, (pad_top, pad_bottom), (pad_left, pad_right))


class SamePad2d:
    """Mimics tensorflow's 'SAME' padding (Pallas TPU implementation)."""

    def __init__(self, kernel_size, stride):
        self.kernel_size = _pair(kernel_size)
        self.stride = _pair(stride)

    def __call__(self, x):
        return same_pad_2d(x, self.kernel_size, self.stride)


# --------------------------------- main --------------------------------------

if __name__ == "__main__":
    key = jax.random.PRNGKey(0)
    x = jax.random.normal(key, (2, 4, 16, 16), jnp.float32)   # NCHW, as in PyTorch

    # SamePad2d(3, 1): as used before the 3x3 convs -> 16x16 -> 18x18
    pad31 = jax.jit(functools.partial(same_pad_2d, kernel_size=3, stride=1))
    y1 = jax.block_until_ready(pad31(x))
    assert y1.shape == (2, 4, 18, 18), y1.shape
    ref1 = jnp.pad(x, ((0, 0), (0, 0), (1, 1), (1, 1)))
    assert jnp.array_equal(y1, ref1)

    # SamePad2d(3, 2): as used before the stem max-pool -> 16x16 -> 17x17
    pad32 = jax.jit(functools.partial(same_pad_2d, kernel_size=3, stride=2))
    y2 = jax.block_until_ready(pad32(x))
    assert y2.shape == (2, 4, 17, 17), y2.shape
    ref2 = jnp.pad(x, ((0, 0), (0, 0), (0, 1), (0, 1)))
    assert jnp.array_equal(y2, ref2)

    assert jnp.isfinite(y1).all() and jnp.isfinite(y2).all()
    print("KERNEL_OK")
</pallas_src>

<mosaic_0001>
module attributes {stable_mosaic.version = 11 : i64} {
  func.func @_same_pad_kernel(%arg0: i32, %arg1: memref<8x16x16xf32, #tpu.memory_space<vmem>>, %arg2: memref<8x18x18xf32, #tpu.memory_space<vmem>>) attributes {dimension_semantics = [#tpu.dimension_semantics<parallel>], iteration_bounds = array<i64: 1>, scalar_prefetch = 0 : i64, scratch_operands = 0 : i64, tpu.core_type = #tpu.core_type<tc>, window_params = [{transform_indices = @transform_0, window_bounds = array<i64: 8, 16, 16>}, {transform_indices = @transform_1, window_bounds = array<i64: 8, 18, 18>}]} {
    %c0 = arith.constant 0 : index
    %c0_0 = arith.constant 0 : index
    %c0_1 = arith.constant 0 : index
    %0 = vector.load %arg1[%c0, %c0_0, %c0_1] : memref<8x16x16xf32, #tpu.memory_space<vmem>>, vector<8x16x16xf32>
    %cst = arith.constant 0.000000e+00 : f32
    %1 = vector.broadcast %cst : f32 to vector<8x16x1xf32>
    %cst_2 = arith.constant 0.000000e+00 : f32
    %2 = vector.broadcast %cst_2 : f32 to vector<8x16x1xf32>
    %3 = tpu.concatenate %1, %0, %2 in 2 : vector<8x16x1xf32>, vector<8x16x16xf32>, vector<8x16x1xf32> -> vector<8x16x18xf32>
    %cst_3 = arith.constant 0.000000e+00 : f32
    %4 = vector.broadcast %cst_3 : f32 to vector<8x1x18xf32>
    %cst_4 = arith.constant 0.000000e+00 : f32
    %5 = vector.broadcast %cst_4 : f32 to vector<8x1x18xf32>
    %6 = tpu.concatenate %4, %3, %5 in 1 : vector<8x1x18xf32>, vector<8x16x18xf32>, vector<8x1x18xf32> -> vector<8x18x18xf32>
    %c0_5 = arith.constant 0 : index
    %c0_6 = arith.constant 0 : index
    %c0_7 = arith.constant 0 : index
    %7 = vector.load %arg2[%c0_5, %c0_6, %c0_7] : memref<8x18x18xf32, #tpu.memory_space<vmem>>, vector<8x18x18xf32>
    tpu.vector_store %arg2[%c0_5, %c0_6, %c0_7], %6 {strides = array<i32>} : memref<8x18x18xf32, #tpu.memory_space<vmem>>, vector<8x18x18xf32>,
    return
  }
  func.func @transform_0(%arg0: i32) -> (i32, i32, i32) {
    %c0_i32 = arith.constant 0 : i32
    %c0_i32_0 = arith.constant 0 : i32
    %c0_i32_1 = arith.constant 0 : i32
    return %arg0, %c0_i32, %c0_i32_0 : i32, i32, i32
  }
  func.func @transform_1(%arg0: i32) -> (i32, i32, i32) {
    %c0_i32 = arith.constant 0 : i32
    %c0_i32_0 = arith.constant 0 : i32
    %c0_i32_1 = arith.constant 0 : i32
    return %arg0, %c0_i32, %c0_i32_0 : i32, i32, i32
  }
}

</mosaic_0001>

<llo_original>
// kernel: same_pad_2d.1
$region0: #{same_pad_2d.1}
  #allocation0 [shape = 'u32[]', space=smem, size = 0x4, offset = 0x4, fixed_abs, tag = 'smem constant byte address 0x4 - core index']
  #allocation1 [shape = 'u32[144,128]{1,0:T(1,128)}', space=vmem, size = 0x12000, scoped, tag = 'internal scratch']
  %s0 = inlined_call_operand.hbm [shape: f32[8,16,16], index: 0, kind: input, shape index: {}]
  %s1 = inlined_call_operand.vmem [shape: f32[8,18,18], index: 1, kind: output, shape index: {}]
  %s2 = sld [smem:[#allocation0]]
  $region18: #{same_pad_2d.1} parent=0
    _
  %s4 = ssub.s32 1, %s2
  %s5 = scalar_select 0, %s4, %s2
  $region1: #{same_pad_2d.1} parent=0
    #allocation2 [shape = 'u8[65536]{0}', space=vmem, size = 0x10000, scoped, tag = 'input window, operand 0, single buffered']
    #allocation3 [shape = 's32[1]{0}', space=sflag, size = 0x4, scoped, tag = 'scoped memory for same_pad_2d.1']
    %6 = vsyncpa [#allocation3], 0
    // Predicated region
    $region2: #{same_pad_2d.1} parent=1 // pred_check
      _
    $region3: #{same_pad_2d.1} parent=1 // pred_check_branch
      %8 = sbr.rel (0) target = $region5
    $region4: #{same_pad_2d.1} parent=1 // pred_region
      %s10 = ssub.s32 2048, 2048
      %11 = vsyncadd [#allocation3], %s10
      %s12 = sshll.u32 [#allocation2], 4
      %s13 = int_to_ptr.vmem [resolvable:$true] %s12
      %18 = dma.hbm_to_vmem [thread:$0]  %s0, 2048, %s13, [#allocation3], 128, 128, 8
    $region5: #{same_pad_2d.1} parent=1 // pred_fallthru
      _
    // Predicated region
    $region6: #{same_pad_2d.1} parent=1 // pred_check
      _
    $region7: #{same_pad_2d.1} parent=1 // pred_check_branch
      %20 = sbr.rel (0) target = $region9
    $region8: #{same_pad_2d.1} parent=1 // pred_region
      %21 = dma.done [#allocation3], 2048
    $region9: #{same_pad_2d.1} parent=1 // pred_fallthru
      _
    %v22 = vld [vmem:[#allocation2] sm:$0xff]
    %v23 = vld [vmem:[#allocation2 + $0x8] sm:$0xff]
    %v24 = vld [vmem:[#allocation2 + $0x10] sm:$0xff]
    %v25 = vld [vmem:[#allocation2 + $0x18] sm:$0xff]
    %v26 = vld [vmem:[#allocation2 + $0x20] sm:$0xff]
    %v27 = vld [vmem:[#allocation2 + $0x28] sm:$0xff]
    %v28 = vld [vmem:[#allocation2 + $0x30] sm:$0xff]
    %v29 = vld [vmem:[#allocation2 + $0x38] sm:$0xff]
    %v30 = vld [vmem:[#allocation2 + $0x40] sm:$0xff]
    %v31 = vld [vmem:[#allocation2 + $0x48] sm:$0xff]
    %v32 = vld [vmem:[#allocation2 + $0x50] sm:$0xff]
    %v33 = vld [vmem:[#allocation2 + $0x58] sm:$0xff]
    %v34 = vld [vmem:[#allocation2 + $0x60] sm:$0xff]
    %v35 = vld [vmem:[#allocation2 + $0x68] sm:$0xff]
    %v36 = vld [vmem:[#allocation2 + $0x70] sm:$0xff]
    %v37 = vld [vmem:[#allocation2 + $0x78] sm:$0xff]
    %54 = vrot.lane.b32.xlu0 %v22, 1
    %v55 = vpop.permute.xlu0 %54
    %56 = vrot.lane.b32.xlu0 %v23, 1
    %v57 = vpop.permute.xlu0 %56
    %58 = vrot.lane.b32.xlu0 %v24, 1
    %v59 = vpop.permute.xlu0 %58
    %60 = vrot.lane.b32.xlu0 %v25, 1
    %v61 = vpop.permute.xlu0 %60
    %62 = vrot.lane.b32.xlu0 %v26, 1
    %v63 = vpop.permute.xlu0 %62
    %64 = vrot.lane.b32.xlu0 %v27, 1
    %v65 = vpop.permute.xlu0 %64
    %66 = vrot.lane.b32.xlu0 %v28, 1
    %v67 = vpop.permute.xlu0 %66
    %68 = vrot.lane.b32.xlu0 %v29, 1
    %v69 = vpop.permute.xlu0 %68
    %70 = vrot.lane.b32.xlu0 %v30, 1
    %v71 = vpop.permute.xlu0 %70
    %72 = vrot.lane.b32.xlu0 %v31, 1
    %v73 = vpop.permute.xlu0 %72
    %74 = vrot.lane.b32.xlu0 %v32, 1
    %v75 = vpop.permute.xlu0 %74
    %76 = vrot.lane.b32.xlu0 %v33, 1
    %v77 = vpop.permute.xlu0 %76
    %78 = vrot.lane.b32.xlu0 %v34, 1
    %v79 = vpop.permute.xlu0 %78
    %80 = vrot.lane.b32.xlu0 %v35, 1
    %v81 = vpop.permute.xlu0 %80
    %82 = vrot.lane.b32.xlu0 %v36, 1
    %v83 = vpop.permute.xlu0 %82
    %84 = vrot.lane.b32.xlu0 %v37, 1
    %v85 = vpop.permute.xlu0 %84
    %vm102 = vcmask 7168
    %v103 = vsel %vm102, 0.0, %v55
    %v104 = vsel %vm102, 0.0, %v57
    %v105 = vsel %vm102, 0.0, %v59
    %v106 = vsel %vm102, 0.0, %v61
    %v107 = vsel %vm102, 0.0, %v63
    %v108 = vsel %vm102, 0.0, %v65
    %v109 = vsel %vm102, 0.0, %v67
    %v110 = vsel %vm102, 0.0, %v69
    %v111 = vsel %vm102, 0.0, %v71
    %v112 = vsel %vm102, 0.0, %v73
    %v113 = vsel %vm102, 0.0, %v75
    %v114 = vsel %vm102, 0.0, %v77
    %v115 = vsel %vm102, 0.0, %v79
    %v116 = vsel %vm102, 0.0, %v81
    %v117 = vsel %vm102, 0.0, %v83
    %v118 = vsel %vm102, 0.0, %v85
    %vm119 = vcmask 138240
    %v120 = vsel %vm119, %v103, 0.0
    %v121 = vsel %vm119, %v104, 0.0
    %v122 = vsel %vm119, %v105, 0.0
    %v123 = vsel %vm119, %v106, 0.0
    %v124 = vsel %vm119, %v107, 0.0
    %v125 = vsel %vm119, %v108, 0.0
    %v126 = vsel %vm119, %v109, 0.0
    %v127 = vsel %vm119, %v110, 0.0
    %v128 = vsel %vm119, %v111, 0.0
    %v129 = vsel %vm119, %v112, 0.0
    %v130 = vsel %vm119, %v113, 0.0
    %v131 = vsel %vm119, %v114, 0.0
    %v132 = vsel %vm119, %v115, 0.0
    %v133 = vsel %vm119, %v116, 0.0
    %v134 = vsel %vm119, %v117, 0.0
    %v135 = vsel %vm119, %v118, 0.0
    %vm152 = vcmask 1040384
    %v153 = vrot.slane %v120, 7
    %v154 = vrot.slane %v121, 7
    %v155 = vsel %vm152, %v153, %v154
    %v156 = vrot.slane %v122, 7
    %v157 = vrot.slane %v123, 7
    %v158 = vsel %vm152, %v156, %v157
    %v159 = vrot.slane %v124, 7
    %v160 = vrot.slane %v125, 7
    %v161 = vsel %vm152, %v159, %v160
    %v162 = vrot.slane %v126, 7
    %v163 = vrot.slane %v127, 7
    %v164 = vsel %vm152, %v162, %v163
    %v165 = vrot.slane %v128, 7
    %v166 = vrot.slane %v129, 7
    %v167 = vsel %vm152, %v165, %v166
    %v168 = vrot.slane %v130, 7
    %v169 = vrot.slane %v131, 7
    %v170 = vsel %vm152, %v168, %v169
    %v171 = vrot.slane %v132, 7
    %v172 = vrot.slane %v133, 7
    %v173 = vsel %vm152, %v171, %v172
    %v174 = vrot.slane %v134, 7
    %v175 = vrot.slane %v135, 7
    %v176 = vsel %vm152, %v174, %v175
    %v201 = vsel %vm152, 0.0, %v153
    %v202 = vsel %vm152, 0.0, %v156
    %v203 = vsel %vm152, 0.0, %v159
    %v204 = vsel %vm152, 0.0, %v162
    %v205 = vsel %vm152, 0.0, %v165
    %v206 = vsel %vm152, 0.0, %v168
    %v207 = vsel %vm152, 0.0, %v171
    %v208 = vsel %vm152, 0.0, %v174
    %v209 = vsel %vm152, %v154, 0.0
    %v210 = vsel %vm152, %v157, 0.0
    %v211 = vsel %vm152, %v160, 0.0
    %v212 = vsel %vm152, %v163, 0.0
    %v213 = vsel %vm152, %v166, 0.0
    %v214 = vsel %vm152, %v169, 0.0
    %v215 = vsel %vm152, %v172, 0.0
    %v216 = vsel %vm152, %v175, 0.0
    %vm217 = vcmask 146432
    %218 = vst.msk [vmem:[%s1] sm:$0xff] %vm217, %v201
    %219 = vst.msk [vmem:[%s1 + $0x8] sm:$0xff] %vm217, %v155
    %vm220 = vcmask 140288
    %221 = vst.msk [vmem:[%s1 + $0x10] sm:$0x3] %vm220, %v209
    %222 = vst.msk [vmem:[%s1 + $0x18] sm:$0xff] %vm217, %v202
    %223 = vst.msk [vmem:[%s1 + $0x20] sm:$0xff] %vm217, %v158
    %224 = vst.msk [vmem:[%s1 + $0x28] sm:$0x3] %vm220, %v210
    %225 = vst.msk [vmem:[%s1 + $0x30] sm:$0xff] %vm217, %v203
    %226 = vst.msk [vmem:[%s1 + $0x38] sm:$0xff] %vm217, %v161
    %227 = vst.msk [vmem:[%s1 + $0x40] sm:$0x3] %vm220, %v211
    %228 = vst.msk [vmem:[%s1 + $0x48] sm:$0xff] %vm217, %v204
    %229 = vst.msk [vmem:[%s1 + $0x50] sm:$0xff] %vm217, %v164
    %230 = vst.msk [vmem:[%s1 + $0x58] sm:$0x3] %vm220, %v212
    %231 = vst.msk [vmem:[%s1 + $0x60] sm:$0xff] %vm217, %v205
    %232 = vst.msk [vmem:[%s1 + $0x68] sm:$0xff] %vm217, %v167
    %233 = vst.msk [vmem:[%s1 + $0x70] sm:$0x3] %vm220, %v213
    %234 = vst.msk [vmem:[%s1 + $0x78] sm:$0xff] %vm217, %v206
    %235 = vst.msk [vmem:[%s1 + $0x80] sm:$0xff] %vm217, %v170
    %236 = vst.msk [vmem:[%s1 + $0x88] sm:$0x3] %vm220, %v214
    %237 = vst.msk [vmem:[%s1 + $0x90] sm:$0xff] %vm217, %v207
    %238 = vst.msk [vmem:[%s1 + $0x98] sm:$0xff] %vm217, %v173
    %239 = vst.msk [vmem:[%s1 + $0xa0] sm:$0x3] %vm220, %v215
    %240 = vst.msk [vmem:[%s1 + $0xa8] sm:$0xff] %vm217, %v208
    %241 = vst.msk [vmem:[%s1 + $0xb0] sm:$0xff] %vm217, %v176
    %242 = vst.msk [vmem:[%s1 + $0xb8] sm:$0x3] %vm220, %v216
    // Predicated region
    $region10: #{same_pad_2d.1} parent=1 // pred_check
      _
    $region11: #{same_pad_2d.1} parent=1 // pred_check_branch
      %244 = sbr.rel (0) target = $region13
    $region12: #{same_pad_2d.1} parent=1 // pred_region
      _
    $region13: #{same_pad_2d.1} parent=1 // pred_fallthru
      _
    // Predicated region
    $region14: #{same_pad_2d.1} parent=1 // pred_check
      _
    $region15: #{same_pad_2d.1} parent=1 // pred_check_branch
      %246 = sbr.rel (0) target = $region17
    $region16: #{same_pad_2d.1} parent=1 // pred_region
      _
    $region17: #{same_pad_2d.1} parent=1 // pred_fallthru
      _
    %247 = vsyncpa [#allocation3], 1

</llo_original>
